<compile_context>
chip_gen: v5e
topology: v5e:2x2
jax: 0.10.0
libtpu: 0.0.40
codegen_flags: <defaults>
</compile_context>

<pallas_src>
import jax
import jax.numpy as jnp
from jax.experimental import pallas as pl
from jax.experimental.pallas import tpu as pltpu


def _poisson_prior_kernel(logit_ref, z_ref, o_ref):
    # logit_ref: SMEM (1,) f32  -> raw logit parameter
    # z_ref:     VMEM (B, T, K) f32
    # o_ref:     VMEM (B, T, K) f32
    B, T, K = z_ref.shape

    # Full-tile load (keeps the (8,128)-aligned layout; no masked sublane load).
    z = z_ref[...]                                            # (B, T, K)

    # Scalar parameter math done on a 1-element vreg so exp/div use EUP/VPU.
    logit = jnp.full((1, 1, 1), logit_ref[0], dtype=jnp.float32)
    p = jax.nn.sigmoid(0.3 * logit)                           # (1,1,1)
    npp = (1.0 - p) / (K - 1)                                 # (1,1,1)

    # z @ A with A = npp*ones(K,K) + (p-npp)*I
    #   == npp * rowsum(z) + (p - npp) * z     (XLU reduction + VPU FMA)
    y = npp * jnp.sum(z, axis=-1, keepdims=True) + (p - npp) * z   # (B, T, K)

    # Time-shift by one step along T (sublane roll on the XLU):
    #   y_shift[b, t] = y[b, t-1]   (t == 0 wraps, but is overwritten below)
    y_shift = pltpu.roll(y, shift=1, axis=1)                  # (B, T, K)

    # Overwrite the t == 0 rows with the uniform z0 = 1/K, single full store.
    t_idx = jax.lax.broadcasted_iota(jnp.int32, (B, T, K), dimension=1)
    o_ref[...] = jnp.where(t_idx == 0, jnp.float32(1.0 / K), y_shift)


def poisson_prior_forward(z, logits, *, donate_z: bool = False):
    """z: (B, T, K) float32, logits: (1,) float32 parameter.

    Set donate_z=True (and donate z at the jit boundary) to alias z's HBM
    buffer to the output and save one HBM allocation.
    """
    B, T, K = z.shape
    kwargs = {}
    if donate_z:
        kwargs["input_output_aliases"] = {1: 0}
    return pl.pallas_call(
        _poisson_prior_kernel,
        out_shape=jax.ShapeDtypeStruct((B, T, K), jnp.float32),
        in_specs=[
            pl.BlockSpec(memory_space=pltpu.MemorySpace.SMEM),   # logits (1,)
            pl.BlockSpec(memory_space=pltpu.MemorySpace.VMEM),   # z, full array
        ],
        out_specs=pl.BlockSpec(memory_space=pltpu.MemorySpace.VMEM),
        **kwargs,
    )(logits.astype(jnp.float32), z)


def poisson_prior_reference(z, logits):
    B, T, K = z.shape
    p = jax.nn.sigmoid(0.3 * logits)
    npp = (1.0 - p) / (K - 1)
    I = jnp.eye(K, dtype=jnp.float32)
    A = (1.0 - I) * npp + I * p
    target = jnp.matmul(z, A)
    target = target[:, :-1, :]
    z0 = jnp.ones((B, 1, K), dtype=jnp.float32) / K
    return jnp.concatenate([z0, target], axis=1)


if __name__ == "__main__":
    key = jax.random.PRNGKey(0)
    k_logits, k_z = jax.random.split(key)

    B, T, K = 2, 8, 32

    # Deterministic parameter init (nn.init.normal_ on a single scalar logit).
    logits = jax.random.normal(k_logits, (1,), dtype=jnp.float32)

    # z is a distribution over K states per time step -> softmax of noise.
    z = jax.nn.softmax(jax.random.normal(k_z, (B, T, K), dtype=jnp.float32), axis=-1)

    out = jax.jit(poisson_prior_forward)(z, logits)
    out = jax.block_until_ready(out)

    ref = poisson_prior_reference(z, logits)
    assert out.shape == (B, T, K)
    assert jnp.allclose(out, ref, atol=1e-5, rtol=1e-5), "mismatch vs reference"

    print("KERNEL_OK")
</pallas_src>

<mosaic_0001>
module attributes {stable_mosaic.version = 11 : i64} {
  func.func @_poisson_prior_kernel(%arg0: memref<1xf32, #tpu.memory_space<smem>>, %arg1: memref<2x8x32xf32, #tpu.memory_space<vmem>>, %arg2: memref<2x8x32xf32, #tpu.memory_space<vmem>>) attributes {dimension_semantics = [], scalar_prefetch = 0 : i64, scratch_operands = 0 : i64, tpu.core_type = #tpu.core_type<tc>} {
    %c0 = arith.constant 0 : index
    %c0_0 = arith.constant 0 : index
    %c0_1 = arith.constant 0 : index
    %0 = vector.load %arg1[%c0, %c0_0, %c0_1] : memref<2x8x32xf32, #tpu.memory_space<vmem>>, vector<2x8x32xf32>
    %c0_2 = arith.constant 0 : index
    %1 = memref.load %arg0[%c0_2] : memref<1xf32, #tpu.memory_space<smem>>
    %2 = vector.broadcast %1 : f32 to vector<1x1x1xf32>
    %cst = arith.constant 3.000000e-01 : f32
    %3 = vector.broadcast %cst : f32 to vector<1x1x1xf32>
    %4 = arith.mulf %3, %2 : vector<1x1x1xf32>
    %5 = arith.negf %4 : vector<1x1x1xf32>
    %6 = math.exp %5 : vector<1x1x1xf32>
    %cst_3 = arith.constant 1.000000e+00 : f32
    %7 = vector.broadcast %cst_3 : f32 to vector<1x1x1xf32>
    %8 = arith.addf %7, %6 : vector<1x1x1xf32>
    %9 = arith.divf %7, %8 : vector<1x1x1xf32>
    %cst_4 = arith.constant 1.000000e+00 : f32
    %10 = vector.broadcast %cst_4 : f32 to vector<1x1x1xf32>
    %11 = arith.subf %10, %9 : vector<1x1x1xf32>
    %cst_5 = arith.constant 3.100000e+01 : f32
    %12 = vector.broadcast %cst_5 : f32 to vector<1x1x1xf32>
    %13 = arith.divf %11, %12 : vector<1x1x1xf32>
    %cst_6 = arith.constant dense<0.000000e+00> : vector<2x8xf32>
    %14 = vector.multi_reduction <add>, %0, %cst_6 [2] : vector<2x8x32xf32> to vector<2x8xf32>
    %15 = vector.shape_cast %14 : vector<2x8xf32> to vector<2x8x1xf32>
    %16 = vector.broadcast %13 : vector<1x1x1xf32> to vector<2x8x1xf32>
    %17 = arith.mulf %16, %15 : vector<2x8x1xf32>
    %18 = arith.subf %9, %13 : vector<1x1x1xf32>
    %19 = vector.broadcast %18 : vector<1x1x1xf32> to vector<2x8x32xf32>
    %20 = arith.mulf %19, %0 : vector<2x8x32xf32>
    %21 = vector.broadcast %17 : vector<2x8x1xf32> to vector<2x8x32xf32>
    %22 = arith.addf %21, %20 : vector<2x8x32xf32>
    %c1_i32 = arith.constant 1 : i32
    %23 = tpu.dynamic_rotate %22 by %c1_i32 dim 1 : vector<2x8x32xf32>, i32 -> vector<2x8x32xf32>
    %24 = tpu.iota {dimensions = array<i32: 1>} : vector<2x8x32xi32>
    %c0_i32 = arith.constant 0 : i32
    %25 = vector.broadcast %c0_i32 : i32 to vector<2x8x32xi32>
    %26 = arith.cmpi eq, %24, %25 : vector<2x8x32xi32>
    %cst_7 = arith.constant 3.125000e-02 : f32
    %27 = vector.broadcast %cst_7 : f32 to vector<2x8x32xf32>
    %28 = arith.select %26, %27, %23 : vector<2x8x32xi1>, vector<2x8x32xf32>
    %c0_8 = arith.constant 0 : index
    %c0_9 = arith.constant 0 : index
    %c0_10 = arith.constant 0 : index
    %29 = vector.load %arg2[%c0_8, %c0_9, %c0_10] : memref<2x8x32xf32, #tpu.memory_space<vmem>>, vector<2x8x32xf32>
    tpu.vector_store %arg2[%c0_8, %c0_9, %c0_10], %28 {strides = array<i32>} : memref<2x8x32xf32, #tpu.memory_space<vmem>>, vector<2x8x32xf32>,
    return
  }
}

</mosaic_0001>

<llo_original>
// kernel: poisson_prior_forward.1
$region0: #{poisson_prior_forward.1}
  #allocation0 [shape = 'u32[]', space=smem, size = 0x4, offset = 0x4, fixed_abs, tag = 'smem constant byte address 0x4 - core index']
  #allocation1 [shape = 'u32[72,128]{1,0:T(1,128)}', space=vmem, size = 0x9000, scoped, tag = 'internal scratch']
  #allocation2 [shape = 'f32[1]{0:T(128)S(6)}', space=smem, size = 0x200, scoped, tag = 'scoped memory for poisson_prior_forward.1']
  %s0 = inlined_call_operand.<no memory space> [shape: f32[1], index: 0, kind: input, shape index: {}]
  %s1 = inlined_call_operand.hbm [shape: f32[2,8,32], index: 1, kind: input, shape index: {}]
  %s2 = inlined_call_operand.hbm [shape: f32[2,8,32], index: 2, kind: output, shape index: {}]
  %s3 = sld [smem:[#allocation0]]
  $region22: #{poisson_prior_forward.1} parent=0
    _
  %s5 = ssub.s32 1, %s3
  %s6 = scalar_select 0, %s5, %s3
  %7 = sst [smem:[#allocation2]] %s0
  $region1: #{poisson_prior_forward.1} parent=0
    #allocation3 [shape = 'u8[8192]{0}', space=vmem, size = 0x2000, scoped, tag = 'input window, operand 1, single buffered']
    #allocation4 [shape = 's32[1]{0}', space=sflag, size = 0x4, scoped, tag = 'scoped memory for poisson_prior_forward.1']
    #allocation5 [shape = 's32[1]{0}', space=sflag, size = 0x4, scoped, tag = 'scoped memory for poisson_prior_forward.1']
    #allocation6 [shape = 'u8[8192]{0}', space=vmem, size = 0x2000, scoped, tag = 'output window, operand 0, single buffered']
    %8 = vsyncpa [#allocation4], 0
    %9 = vsyncpa [#allocation5], 0
    // Predicated region
    $region2: #{poisson_prior_forward.1} parent=1 // pred_check
      _
    $region3: #{poisson_prior_forward.1} parent=1 // pred_check_branch
      %11 = sbr.rel (0) target = $region5
    $region4: #{poisson_prior_forward.1} parent=1 // pred_region
      _
    $region5: #{poisson_prior_forward.1} parent=1 // pred_fallthru
      _
    // Predicated region
    $region6: #{poisson_prior_forward.1} parent=1 // pred_check
      _
    $region7: #{poisson_prior_forward.1} parent=1 // pred_check_branch
      %13 = sbr.rel (0) target = $region9
    $region8: #{poisson_prior_forward.1} parent=1 // pred_region
      %15 = vsyncadd [#allocation4], 0
      %s16 = sshll.u32 %s1, 4
      %s17 = int_to_ptr.hbm [resolvable:$true] %s16
      %s18 = sshll.u32 [#allocation3], 4
      %s19 = int_to_ptr.vmem [resolvable:$true] %s18
      %24 = dma.hbm_to_vmem [thread:$0]  %s17, 256, %s19, [#allocation4], 128, 128, 8
    $region9: #{poisson_prior_forward.1} parent=1 // pred_fallthru
      _
    // Predicated region
    $region10: #{poisson_prior_forward.1} parent=1 // pred_check
      _
    $region11: #{poisson_prior_forward.1} parent=1 // pred_check_branch
      %26 = sbr.rel (0) target = $region13
    $region12: #{poisson_prior_forward.1} parent=1 // pred_region
      %28 = dma.done [#allocation4], 256
    $region13: #{poisson_prior_forward.1} parent=1 // pred_fallthru
      _
    %v29 = vld [vmem:[#allocation3] sm:$0xff]
    %v30 = vld [vmem:[#allocation3 + $0x8] sm:$0xff]
    %s31 = sld [smem:[#allocation2]]
    %v32 = vstv %s31
    %v33 = vmul.f32 %v32, 0.3
    %v34 = vxor.u32 %v33, 2147483648
    %v35 = vmul.f32 %v34, 1.442695
    %v36 = vpow.pop %v35
    %v37 = vadd.f32 %v36, 1.0
    %v38 = vrcp.pop %v37
    %v39 = vmul.f32 %v37, %v38
    %v40 = vsub.f32 1.0, %v39
    %v41 = vmul.f32 %v38, %v40
    %v42 = vadd.f32 %v38, %v41
    %vm43 = vweird.f32 %v37
    %vm44 = vweird.f32 %v38
    %vm45 = vmor %vm43, %vm44
    %v46 = vsel %vm45, %v38, %v42
    %v47 = vand.u32 2147483647, %v37
    %vm48 = vcmp.eq.f32.partialorder %v47, 8.507059e+37
    %v49 = vand.u32 %v37, 2147483648
    %v50 = vor.u32 1.1754944e-38, %v49
    %v51 = vsel %vm48, %v50, %v46
    %v52 = vmul.f32 1.0, %v51
    %v53 = vsub.f32 1.0, %v52
    %v54 = vrcp.pop 31.0
    %v55 = vmul.f32 31.0, %v54
    %v56 = vsub.f32 1.0, %v55
    %v57 = vmul.f32 %v54, %v56
    %v58 = vadd.f32 %v54, %v57
    %vm59 = vweird.f32 %v54
    %v60 = vsel %vm59, %v54, %v58
    %v61 = vmul.f32 %v53, %v60
    %vm62 = vcmask 261120
    %v63 = vsel %vm62, %v29, 0.0
    %64 = vadd.xlane.f32.xlu0 %v63
    %v65 = vpop.xlane.xlu0 %64
    %v66 = vsel %vm62, %v30, 0.0
    %67 = vadd.xlane.f32.xlu0 %v66
    %v68 = vpop.xlane.xlu0 %67
    %v69 = vmul.f32 %v61, %v65
    %v70 = vmul.f32 %v61, %v68
    %v71 = vsub.f32 %v52, %v61
    %v72 = vmul.f32 %v71, %v29
    %v73 = vmul.f32 %v71, %v30
    %v74 = vadd.f32 %v69, %v72
    %v75 = vadd.f32 %v70, %v73
    %v76 = vrot.slane %v74, 7
    %v77 = vrot.slane %v75, 7
    %v78 = vlaneseq
    %v79 = vshrl.u32 %v78, 7
    %vm80 = vcmp.eq.s32.totalorder %v79, 0
    %v81 = vsel %vm80, 0.03125, %v76
    %v82 = vsel %vm80, 0.03125, %v77
    %83 = vst.msk [vmem:[#allocation6] sm:$0xff] %vm62, %v81
    %84 = vst.msk [vmem:[#allocation6 + $0x8] sm:$0xff] %vm62, %v82
    // Predicated region
    $region14: #{poisson_prior_forward.1} parent=1 // pred_check
      _
    $region15: #{poisson_prior_forward.1} parent=1 // pred_check_branch
      %86 = sbr.rel (0) target = $region17
    $region16: #{poisson_prior_forward.1} parent=1 // pred_region
      %88 = vsyncadd [#allocation5], 0
      %s89 = sshll.u32 [#allocation6], 4
      %s90 = int_to_ptr.vmem [resolvable:$true] %s89
      %s91 = sshll.u32 %s2, 4
      %s92 = int_to_ptr.hbm [resolvable:$true] %s91
      %97 = dma.vmem_to_hbm [thread:$0]  %s90, 256, %s92, [#allocation5], 128, 128, 8
    $region17: #{poisson_prior_forward.1} parent=1 // pred_fallthru
      _
    // Predicated region
    $region18: #{poisson_prior_forward.1} parent=1 // pred_check
      _
    $region19: #{poisson_prior_forward.1} parent=1 // pred_check_branch
      %99 = sbr.rel (0) target = $region21
    $region20: #{poisson_prior_forward.1} parent=1 // pred_region
      %101 = dma.done [#allocation5], 256
    $region21: #{poisson_prior_forward.1} parent=1 // pred_fallthru
      _
    %102 = vsyncpa [#allocation4], 1
    %103 = vsyncpa [#allocation5], 1

</llo_original>
